<compile_context>
chip_gen: v7x
topology: tpu7x:2x2x1
jax: 0.10.0
libtpu: 0.0.40
codegen_flags: <defaults>
</compile_context>

<pallas_src>
import numpy as np
import jax
import jax.numpy as jnp
from jax.experimental import pallas as pl
from jax.experimental.pallas import tpu as pltpu

NUM_CHANNELS = 2          # Conv1d in/out channels == BatchNorm1d num_features
KERNEL_SIZE = 3
STRIDE = 1
NUM_LABELS = 3
L_IN = 300                # implied by Linear(in_features=298): 2*floor((L_in-3+1)/2)=298
L_CONV = (L_IN - KERNEL_SIZE) // STRIDE + 1      # 298
L_POOL = L_CONV // 2                             # 149
FLAT = NUM_CHANNELS * L_POOL                     # 298 == Linear in_features
BN_EPS = 1e-5
BATCH_TILE = 256                                 # max batch rows per grid step


def _beepnet_kernel(x_ref, wconv_ref, w2a_ref, w2b_ref, blin_ref, out_ref):
    """One batch tile per grid step.

    x_ref    : (BT, C*L_IN)   VMEM  input rows laid out as [ch0[0:300] | ch1[0:300]]
    wconv_ref: (C*C*K,)       SMEM  BN-folded conv weight, index = co*C*K + ci*K + k
    w2a_ref  : (L_CONV, NL)   VMEM  expanded Linear weight, conv channel 0 (odd rows 0)
    w2b_ref  : (L_CONV, NL)   VMEM  expanded Linear weight, conv channel 1 (odd rows 0)
    blin_ref : (1, NL)        VMEM  Linear bias with the folded conv/BN bias added
    out_ref  : (BT, NL)       VMEM  softmax probabilities
    """
    # The 6 shifted input slices are shared by both conv output channels -- hoist them.
    xs = [
        x_ref[:, ci * L_IN + k: ci * L_IN + k + L_CONV]          # (BT, L_CONV)
        for ci in range(NUM_CHANNELS) for k in range(KERNEL_SIZE)
    ]

    logits = blin_ref[...].astype(jnp.float32)                   # (1, NL), broadcasts
    for co, w2_ref in enumerate((w2a_ref, w2b_ref)):
        # Conv1d with BN scale folded in (bias folded into the Linear bias).
        acc = None
        for ci in range(NUM_CHANNELS):
            for k in range(KERNEL_SIZE):
                w = wconv_ref[co * NUM_CHANNELS * KERNEL_SIZE + ci * KERNEL_SIZE + k]
                term = w * xs[ci * KERNEL_SIZE + k]
                acc = term if acc is None else acc + term        # (BT, L_CONV)
        # MaxPool1d(kernel_size=2): pooled[m] = max(acc[2m], acc[2m+1]) lands on even
        # lane 2m of the pair-max slab; odd lanes (incl. the wrapped lane 297) are junk
        # and are zeroed by the expanded Linear weight.
        shifted = jnp.concatenate([acc[:, 1:], acc[:, :1]], axis=-1)  # acc rotated left 1
        pooled = jnp.maximum(acc, shifted)                       # (BT, L_CONV)
        # flatten + Linear for this channel: one small MXU matmul.
        logits = logits + jnp.dot(pooled, w2_ref[...],
                                  preferred_element_type=jnp.float32)

    # Softmax(dim=1)
    m = jnp.max(logits, axis=-1, keepdims=True)
    e = jnp.exp(logits - m)
    out_ref[...] = (e / jnp.sum(e, axis=-1, keepdims=True)).astype(out_ref.dtype)


def _round_up(a, m):
    return (a + m - 1) // m * m


def _pick_batch_tile(b8):
    """Largest tile <= BATCH_TILE (multiple of 8) dividing the rounded batch, else cap."""
    cap = min(BATCH_TILE, b8)
    for bt in range(cap - cap % 8, 63, -8):
        if b8 % bt == 0:
            return bt
    return cap


@jax.jit
def beepnet_forward(x, params):
    w_conv, b_conv, gamma, beta, run_mean, run_var, w_lin, b_lin = params
    B = x.shape[0]

    # ---- fold eval-mode BatchNorm into the conv weights (exact) ----
    bn_scale = gamma / jnp.sqrt(run_var + BN_EPS)                  # (C,) per out-channel
    bn_shift = beta - run_mean * bn_scale                          # (C,)
    w_f = (w_conv * bn_scale[:, None, None]).astype(jnp.float32)   # (C, C, K)
    b_f = (b_conv * bn_scale + bn_shift).astype(jnp.float32)       # (C,) post-BN bias

    # ---- fold the per-channel post-BN bias through MaxPool into the Linear bias ----
    # max(a + b_f, c + b_f) == max(a, c) + b_f, so
    # logits[n] = sum_{c,m} w_lin[n, c*L_POOL+m] * pooled_nobias[c, m]
    #             + (b_lin[n] + sum_c b_f[c] * sum_m w_lin[n, c*L_POOL+m])
    w_lin_cm = w_lin.reshape(NUM_LABELS, NUM_CHANNELS, L_POOL)      # (NL, C, L_POOL)
    b_lin_f = (b_lin + jnp.einsum('ncm,c->n', w_lin_cm, b_f)).astype(jnp.float32)

    # ---- expand the Linear weight onto the conv grid (odd rows zero), per channel ----
    # pooled value (c, m) lives at even lane 2m of channel c's pair-max slab.
    w2 = jnp.zeros((NUM_CHANNELS, L_CONV, NUM_LABELS), jnp.float32)
    w2 = w2.at[:, 0::2, :].set(w_lin_cm.transpose(1, 2, 0))         # (C, L_CONV, NL)

    # ---- batch tiling: batch on sublanes, [ch0 | ch1] on lanes (free reshape) ----
    b8 = _round_up(B, 8)
    bt = _pick_batch_tile(b8)
    b_pad = _round_up(B, bt)
    x2 = x.astype(jnp.float32).reshape(B, NUM_CHANNELS * L_IN)
    if b_pad != B:
        # Junk rows are zeros -> finite logits; sliced off below.
        x2 = jnp.pad(x2, ((0, b_pad - B), (0, 0)))

    out = pl.pallas_call(
        _beepnet_kernel,
        out_shape=jax.ShapeDtypeStruct((b_pad, NUM_LABELS), jnp.float32),
        grid_spec=pltpu.PrefetchScalarGridSpec(
            num_scalar_prefetch=0,
            grid=(b_pad // bt,),
            in_specs=[
                pl.BlockSpec((bt, NUM_CHANNELS * L_IN), lambda b: (b, 0)),
                pl.BlockSpec(memory_space=pltpu.MemorySpace.SMEM),   # folded conv weight
                pl.BlockSpec((L_CONV, NUM_LABELS), lambda b: (0, 0)),
                pl.BlockSpec((L_CONV, NUM_LABELS), lambda b: (0, 0)),
                pl.BlockSpec((1, NUM_LABELS), lambda b: (0, 0)),
            ],
            out_specs=pl.BlockSpec((bt, NUM_LABELS), lambda b: (b, 0)),
        ),
        compiler_params=pltpu.CompilerParams(dimension_semantics=("parallel",)),
    )(x2, w_f.reshape(-1), w2[0], w2[1], b_lin_f.reshape(1, NUM_LABELS))
    return out[:B]


def init_params(key):
    k1, k2, k3, k4 = jax.random.split(key, 4)
    w_conv = 0.5 * jax.random.normal(k1, (NUM_CHANNELS, NUM_CHANNELS, KERNEL_SIZE), jnp.float32)
    b_conv = 0.1 * jax.random.normal(k2, (NUM_CHANNELS,), jnp.float32)
    gamma = jnp.array([1.2, 0.8], jnp.float32)
    beta = jnp.array([0.05, -0.05], jnp.float32)
    run_mean = jnp.array([0.1, -0.2], jnp.float32)
    run_var = jnp.array([0.9, 1.1], jnp.float32)
    w_lin = 0.05 * jax.random.normal(k3, (NUM_LABELS, FLAT), jnp.float32)
    b_lin = 0.1 * jax.random.normal(k4, (NUM_LABELS,), jnp.float32)
    return (w_conv, b_conv, gamma, beta, run_mean, run_var, w_lin, b_lin)


def reference_forward(x, params):
    """Pure-JAX reference matching the PyTorch forward (eval-mode BN, unfolded)."""
    w_conv, b_conv, gamma, beta, run_mean, run_var, w_lin, b_lin = params
    B = x.shape[0]
    conv = jnp.zeros((B, NUM_CHANNELS, L_CONV), jnp.float32) + b_conv[None, :, None]
    for k in range(KERNEL_SIZE):
        conv = conv + jnp.einsum('bil,oi->bol', x[:, :, k:k + L_CONV], w_conv[:, :, k])
    bn = (conv - run_mean[None, :, None]) / jnp.sqrt(run_var + BN_EPS)[None, :, None]
    bn = bn * gamma[None, :, None] + beta[None, :, None]
    pooled = bn.reshape(B, NUM_CHANNELS, L_POOL, 2).max(axis=-1)
    flat = pooled.reshape(B, -1)
    logits = flat @ w_lin.T + b_lin[None, :]
    return jax.nn.softmax(logits, axis=1)


if __name__ == "__main__":
    key = jax.random.PRNGKey(0)
    pkey, xkey = jax.random.split(key)
    params = init_params(pkey)

    # Small batch; 12 is not a multiple of 8 -> exercises the batch-padding path.
    B = 12
    x = jax.random.normal(xkey, (B, NUM_CHANNELS, L_IN), jnp.float32)

    out = jax.block_until_ready(beepnet_forward(x, params))

    ref = reference_forward(x, params)
    np.testing.assert_allclose(np.asarray(out), np.asarray(ref), rtol=1e-4, atol=1e-5)
    assert out.shape == (B, NUM_LABELS)

    print("KERNEL_OK")
</pallas_src>

<mosaic_0001>
module attributes {stable_mosaic.version = 11 : i64} {
  func.func @_beepnet_kernel(%arg0: i32, %arg1: memref<16x600xf32, #tpu.memory_space<vmem>>, %arg2: memref<12xf32, #tpu.memory_space<smem>>, %arg3: memref<298x3xf32, #tpu.memory_space<vmem>>, %arg4: memref<298x3xf32, #tpu.memory_space<vmem>>, %arg5: memref<1x3xf32, #tpu.memory_space<vmem>>, %arg6: memref<16x3xf32, #tpu.memory_space<vmem>>) attributes {dimension_semantics = [#tpu.dimension_semantics<parallel>], iteration_bounds = array<i64: 1>, scalar_prefetch = 0 : i64, scratch_operands = 0 : i64, tpu.core_type = #tpu.core_type<tc>, window_params = [{transform_indices = @transform_0, window_bounds = array<i64: 16, 600>}, {transform_indices = @transform_1, window_bounds = array<i64: 12>}, {pipeline_mode = #tpu.pipeline_mode<synchronous>, transform_indices = @transform_2, window_bounds = array<i64: 298, 3>}, {pipeline_mode = #tpu.pipeline_mode<synchronous>, transform_indices = @transform_3, window_bounds = array<i64: 298, 3>}, {pipeline_mode = #tpu.pipeline_mode<synchronous>, transform_indices = @transform_4, window_bounds = array<i64: 1, 3>}, {transform_indices = @transform_5, window_bounds = array<i64: 16, 3>}]} {
    %c0 = arith.constant 0 : index
    %c0_0 = arith.constant 0 : index
    %0 = vector.load %arg1[%c0, %c0_0] : memref<16x600xf32, #tpu.memory_space<vmem>>, vector<16x298xf32>
    %c0_1 = arith.constant 0 : index
    %c1 = arith.constant 1 : index
    %1 = vector.load %arg1[%c0_1, %c1] : memref<16x600xf32, #tpu.memory_space<vmem>>, vector<16x298xf32>
    %c0_2 = arith.constant 0 : index
    %c2 = arith.constant 2 : index
    %2 = vector.load %arg1[%c0_2, %c2] : memref<16x600xf32, #tpu.memory_space<vmem>>, vector<16x298xf32>
    %c0_3 = arith.constant 0 : index
    %c300 = arith.constant 300 : index
    %3 = vector.load %arg1[%c0_3, %c300] : memref<16x600xf32, #tpu.memory_space<vmem>>, vector<16x298xf32>
    %c0_4 = arith.constant 0 : index
    %c301 = arith.constant 301 : index
    %4 = vector.load %arg1[%c0_4, %c301] : memref<16x600xf32, #tpu.memory_space<vmem>>, vector<16x298xf32>
    %c0_5 = arith.constant 0 : index
    %c302 = arith.constant 302 : index
    %5 = vector.load %arg1[%c0_5, %c302] : memref<16x600xf32, #tpu.memory_space<vmem>>, vector<16x298xf32>
    %c0_6 = arith.constant 0 : index
    %c0_7 = arith.constant 0 : index
    %6 = vector.load %arg5[%c0_6, %c0_7] : memref<1x3xf32, #tpu.memory_space<vmem>>, vector<1x3xf32>
    %c0_8 = arith.constant 0 : index
    %7 = memref.load %arg2[%c0_8] : memref<12xf32, #tpu.memory_space<smem>>
    %8 = vector.broadcast %7 : f32 to vector<16x298xf32>
    %9 = arith.mulf %8, %0 : vector<16x298xf32>
    %c1_9 = arith.constant 1 : index
    %10 = memref.load %arg2[%c1_9] : memref<12xf32, #tpu.memory_space<smem>>
    %11 = vector.broadcast %10 : f32 to vector<16x298xf32>
    %12 = arith.mulf %11, %1 : vector<16x298xf32>
    %13 = arith.addf %9, %12 : vector<16x298xf32>
    %c2_10 = arith.constant 2 : index
    %14 = memref.load %arg2[%c2_10] : memref<12xf32, #tpu.memory_space<smem>>
    %15 = vector.broadcast %14 : f32 to vector<16x298xf32>
    %16 = arith.mulf %15, %2 : vector<16x298xf32>
    %17 = arith.addf %13, %16 : vector<16x298xf32>
    %c3 = arith.constant 3 : index
    %18 = memref.load %arg2[%c3] : memref<12xf32, #tpu.memory_space<smem>>
    %19 = vector.broadcast %18 : f32 to vector<16x298xf32>
    %20 = arith.mulf %19, %3 : vector<16x298xf32>
    %21 = arith.addf %17, %20 : vector<16x298xf32>
    %c4 = arith.constant 4 : index
    %22 = memref.load %arg2[%c4] : memref<12xf32, #tpu.memory_space<smem>>
    %23 = vector.broadcast %22 : f32 to vector<16x298xf32>
    %24 = arith.mulf %23, %4 : vector<16x298xf32>
    %25 = arith.addf %21, %24 : vector<16x298xf32>
    %c5 = arith.constant 5 : index
    %26 = memref.load %arg2[%c5] : memref<12xf32, #tpu.memory_space<smem>>
    %27 = vector.broadcast %26 : f32 to vector<16x298xf32>
    %28 = arith.mulf %27, %5 : vector<16x298xf32>
    %29 = arith.addf %25, %28 : vector<16x298xf32>
    %30 = vector.extract_strided_slice %29 {offsets = [0, 1], sizes = [16, 297], strides = [1, 1]} : vector<16x298xf32> to vector<16x297xf32>
    %31 = vector.extract_strided_slice %29 {offsets = [0, 0], sizes = [16, 1], strides = [1, 1]} : vector<16x298xf32> to vector<16x1xf32>
    %32 = tpu.concatenate %30, %31 in 1 : vector<16x297xf32>, vector<16x1xf32> -> vector<16x298xf32>
    %33 = arith.maximumf %29, %32 : vector<16x298xf32>
    %c0_11 = arith.constant 0 : index
    %c0_12 = arith.constant 0 : index
    %34 = vector.load %arg3[%c0_11, %c0_12] : memref<298x3xf32, #tpu.memory_space<vmem>>, vector<298x3xf32>
    %cst = arith.constant dense<0.000000e+00> : vector<16x3xf32>
    %35 = tpu.matmul %33, %34, %cst {dimension_numbers = #tpu.dot_dimension_numbers<[1], [0], [0], [1], [0, 0, 1, 1], [], []>} : vector<16x298xf32>, vector<298x3xf32>, vector<16x3xf32> -> vector<16x3xf32>
    %36 = vector.broadcast %6 : vector<1x3xf32> to vector<16x3xf32>
    %37 = arith.addf %36, %35 : vector<16x3xf32>
    %c6 = arith.constant 6 : index
    %38 = memref.load %arg2[%c6] : memref<12xf32, #tpu.memory_space<smem>>
    %39 = vector.broadcast %38 : f32 to vector<16x298xf32>
    %40 = arith.mulf %39, %0 : vector<16x298xf32>
    %c7 = arith.constant 7 : index
    %41 = memref.load %arg2[%c7] : memref<12xf32, #tpu.memory_space<smem>>
    %42 = vector.broadcast %41 : f32 to vector<16x298xf32>
    %43 = arith.mulf %42, %1 : vector<16x298xf32>
    %44 = arith.addf %40, %43 : vector<16x298xf32>
    %c8 = arith.constant 8 : index
    %45 = memref.load %arg2[%c8] : memref<12xf32, #tpu.memory_space<smem>>
    %46 = vector.broadcast %45 : f32 to vector<16x298xf32>
    %47 = arith.mulf %46, %2 : vector<16x298xf32>
    %48 = arith.addf %44, %47 : vector<16x298xf32>
    %c9 = arith.constant 9 : index
    %49 = memref.load %arg2[%c9] : memref<12xf32, #tpu.memory_space<smem>>
    %50 = vector.broadcast %49 : f32 to vector<16x298xf32>
    %51 = arith.mulf %50, %3 : vector<16x298xf32>
    %52 = arith.addf %48, %51 : vector<16x298xf32>
    %c10 = arith.constant 10 : index
    %53 = memref.load %arg2[%c10] : memref<12xf32, #tpu.memory_space<smem>>
    %54 = vector.broadcast %53 : f32 to vector<16x298xf32>
    %55 = arith.mulf %54, %4 : vector<16x298xf32>
    %56 = arith.addf %52, %55 : vector<16x298xf32>
    %c11 = arith.constant 11 : index
    %57 = memref.load %arg2[%c11] : memref<12xf32, #tpu.memory_space<smem>>
    %58 = vector.broadcast %57 : f32 to vector<16x298xf32>
    %59 = arith.mulf %58, %5 : vector<16x298xf32>
    %60 = arith.addf %56, %59 : vector<16x298xf32>
    %61 = vector.extract_strided_slice %60 {offsets = [0, 1], sizes = [16, 297], strides = [1, 1]} : vector<16x298xf32> to vector<16x297xf32>
    %62 = vector.extract_strided_slice %60 {offsets = [0, 0], sizes = [16, 1], strides = [1, 1]} : vector<16x298xf32> to vector<16x1xf32>
    %63 = tpu.concatenate %61, %62 in 1 : vector<16x297xf32>, vector<16x1xf32> -> vector<16x298xf32>
    %64 = arith.maximumf %60, %63 : vector<16x298xf32>
    %c0_13 = arith.constant 0 : index
    %c0_14 = arith.constant 0 : index
    %65 = vector.load %arg4[%c0_13, %c0_14] : memref<298x3xf32, #tpu.memory_space<vmem>>, vector<298x3xf32>
    %cst_15 = arith.constant dense<0.000000e+00> : vector<16x3xf32>
    %66 = tpu.matmul %64, %65, %cst_15 {dimension_numbers = #tpu.dot_dimension_numbers<[1], [0], [0], [1], [0, 0, 1, 1], [], []>} : vector<16x298xf32>, vector<298x3xf32>, vector<16x3xf32> -> vector<16x3xf32>
    %67 = arith.addf %37, %66 : vector<16x3xf32>
    %cst_16 = arith.constant dense<0xFF800000> : vector<16xf32>
    %68 = vector.multi_reduction <maximumf>, %67, %cst_16 [1] : vector<16x3xf32> to vector<16xf32>
    %69 = vector.shape_cast %68 : vector<16xf32> to vector<16x1xf32>
    %70 = vector.broadcast %69 : vector<16x1xf32> to vector<16x3xf32>
    %71 = arith.subf %67, %70 : vector<16x3xf32>
    %72 = math.exp %71 : vector<16x3xf32>
    %cst_17 = arith.constant dense<0.000000e+00> : vector<16xf32>
    %73 = vector.multi_reduction <add>, %72, %cst_17 [1] : vector<16x3xf32> to vector<16xf32>
    %74 = vector.shape_cast %73 : vector<16xf32> to vector<16x1xf32>
    %75 = vector.broadcast %74 : vector<16x1xf32> to vector<16x3xf32>
    %76 = arith.divf %72, %75 : vector<16x3xf32>
    %c0_18 = arith.constant 0 : index
    %c0_19 = arith.constant 0 : index
    %77 = vector.load %arg6[%c0_18, %c0_19] : memref<16x3xf32, #tpu.memory_space<vmem>>, vector<16x3xf32>
    tpu.vector_store %arg6[%c0_18, %c0_19], %76 {strides = array<i32>} : memref<16x3xf32, #tpu.memory_space<vmem>>, vector<16x3xf32>,
    return
  }
  func.func @transform_0(%arg0: i32) -> (i32, i32) {
    %c0_i32 = arith.constant 0 : i32
    %c0_i32_0 = arith.constant 0 : i32
    return %arg0, %c0_i32 : i32, i32
  }
  func.func @transform_1(%arg0: i32) -> i32 {
    %c0_i32 = arith.constant 0 : i32
    %c0_i32_0 = arith.constant 0 : i32
    return %c0_i32 : i32
  }
  func.func @transform_2(%arg0: i32) -> (i32, i32) {
    %c0_i32 = arith.constant 0 : i32
    %c0_i32_0 = arith.constant 0 : i32
    %c0_i32_1 = arith.constant 0 : i32
    return %c0_i32, %c0_i32_0 : i32, i32
  }
  func.func @transform_3(%arg0: i32) -> (i32, i32) {
    %c0_i32 = arith.constant 0 : i32
    %c0_i32_0 = arith.constant 0 : i32
    %c0_i32_1 = arith.constant 0 : i32
    return %c0_i32, %c0_i32_0 : i32, i32
  }
  func.func @transform_4(%arg0: i32) -> (i32, i32) {
    %c0_i32 = arith.constant 0 : i32
    %c0_i32_0 = arith.constant 0 : i32
    %c0_i32_1 = arith.constant 0 : i32
    return %c0_i32, %c0_i32_0 : i32, i32
  }
  func.func @transform_5(%arg0: i32) -> (i32, i32) {
    %c0_i32 = arith.constant 0 : i32
    %c0_i32_0 = arith.constant 0 : i32
    return %arg0, %c0_i32 : i32, i32
  }
}

</mosaic_0001>

<llo_original>
// kernel: beepnet_forward.1
$region0: #{beepnet_forward.1}
  #allocation0 [shape = 'u32[]', space=smem, size = 0x4, offset = 0x4, fixed_abs, tag = 'smem constant byte address 0x4 - core index']
  #allocation1 [shape = 'u32[144,128]{1,0:T(1,128)}', space=vmem, size = 0x12000, scoped, tag = 'internal scratch']
  %s0 = inlined_call_operand.vmem [shape: f32[16,600], index: 0, kind: input, shape index: {}]
  %s1 = inlined_call_operand.vmem [shape: f32[12], index: 1, kind: input, shape index: {}]
  %s2 = inlined_call_operand.vmem [shape: f32[298,3], index: 2, kind: input, shape index: {}]
  %s3 = inlined_call_operand.vmem [shape: f32[298,3], index: 3, kind: input, shape index: {}]
  %s4 = inlined_call_operand.vmem [shape: f32[1,3], index: 4, kind: input, shape index: {}]
  %s5 = inlined_call_operand.vmem [shape: f32[16,3], index: 5, kind: output, shape index: {}]
  %s6 = sld [smem:[#allocation0]]
  $region34: #{beepnet_forward.1} parent=0
    _
  %s8 = ssub.s32 1, %s6
  %s9 = scalar_select 0, %s8, %s6
  $region1: #{beepnet_forward.1} parent=0
    #allocation2 [shape = 'u8[512]{0}', space=smem, size = 0x200, scoped, tag = 'input window, operand 1, single buffered']
    #allocation3 [shape = 's32[1]{0}', space=sflag, size = 0x4, scoped, tag = 'scoped memory for beepnet_forward.1']
    %10 = vsyncpa [#allocation3], 0
    // Predicated region
    $region2: #{beepnet_forward.1} parent=1 // pred_check
      _
    $region3: #{beepnet_forward.1} parent=1 // pred_check_branch
      %12 = sbr.rel (0) target = $region5
    $region4: #{beepnet_forward.1} parent=1 // pred_region
      _
    $region5: #{beepnet_forward.1} parent=1 // pred_fallthru
      _
    // Predicated region
    $region6: #{beepnet_forward.1} parent=1 // pred_check
      _
    $region7: #{beepnet_forward.1} parent=1 // pred_check_branch
      %14 = sbr.rel (0) target = $region9
    $region8: #{beepnet_forward.1} parent=1 // pred_region
      %s16 = ssub.s32 16, 16
      %17 = vsyncadd [#allocation3], %s16
      %s19 = sshll.u32 %s1, 4
      %s20 = int_to_ptr.vmem [resolvable:$true] %s19
      %22 = dma.vmem_to_smem %s20, 16, [#allocation2], [#allocation3]
    $region9: #{beepnet_forward.1} parent=1 // pred_fallthru
      _
    // Predicated region
    $region10: #{beepnet_forward.1} parent=1 // pred_check
      _
    $region11: #{beepnet_forward.1} parent=1 // pred_check_branch
      %24 = sbr.rel (0) target = $region13
    $region12: #{beepnet_forward.1} parent=1 // pred_region
      _
    $region13: #{beepnet_forward.1} parent=1 // pred_fallthru
      _
    // Predicated region
    $region14: #{beepnet_forward.1} parent=1 // pred_check
      _
    $region15: #{beepnet_forward.1} parent=1 // pred_check_branch
      %26 = sbr.rel (0) target = $region17
    $region16: #{beepnet_forward.1} parent=1 // pred_region
      _
    $region17: #{beepnet_forward.1} parent=1 // pred_fallthru
      _
    // Predicated region
    $region18: #{beepnet_forward.1} parent=1 // pred_check
      _
    $region19: #{beepnet_forward.1} parent=1 // pred_check_branch
      %28 = sbr.rel (0) target = $region21
    $region20: #{beepnet_forward.1} parent=1 // pred_region
      _
    $region21: #{beepnet_forward.1} parent=1 // pred_fallthru
      _
    // Predicated region
    $region22: #{beepnet_forward.1} parent=1 // pred_check
      _
    $region23: #{beepnet_forward.1} parent=1 // pred_check_branch
      %30 = sbr.rel (0) target = $region25
    $region24: #{beepnet_forward.1} parent=1 // pred_region
      %31 = dma.done [#allocation3], 16
    $region25: #{beepnet_forward.1} parent=1 // pred_fallthru
      _
    %32 = sfence
    %v33 = vld [vmem:[%s0] sm:$0xff]
    %v34 = vld [vmem:[%s0 + $0x8] sm:$0xff]
    %v35 = vld [vmem:[%s0 + $0x10] sm:$0xff]
    %v36 = vld [vmem:[%s0 + $0x28] sm:$0xff]
    %v37 = vld [vmem:[%s0 + $0x30] sm:$0xff]
    %v38 = vld [vmem:[%s0 + $0x38] sm:$0xff]
    %v39 = vld [vmem:[%s0 + $0x18] sm:$0xff]
    %v40 = vld [vmem:[%s0 + $0x20] sm:$0xff]
    %v41 = vld [vmem:[%s0 + $0x40] sm:$0xff]
    %v42 = vld [vmem:[%s0 + $0x48] sm:$0xff]
    %v43 = vld [vmem:[%s4] sm:$0x1]
    %s44 = sld [smem:[#allocation2]]
    %v45 = vstv %s44
    %v46 = vmul.f32 %v45, %v33
    %v47 = vmul.f32 %v45, %v34
    %v48 = vmul.f32 %v45, %v35
    %v49 = vmul.f32 %v45, %v36
    %v50 = vmul.f32 %v45, %v37
    %v51 = vmul.f32 %v45, %v38
    %s52 = sld [smem:[#allocation2 + $0x1]]
    %v53 = vstv %s52
    %v54 = vmul.f32 %v53, %v33
    %v55 = vmul.f32 %v53, %v34
    %v56 = vmul.f32 %v53, %v35
    %v57 = vmul.f32 %v53, %v36
    %v58 = vmul.f32 %v53, %v37
    %v59 = vmul.f32 %v53, %v38
    %66 = vrot.lane.b32.xlu0 %v54, 127
    %v67 = vpop.permute.xlu0 %66
    %68 = vrot.lane.b32.xlu0 %v55, 127
    %v69 = vpop.permute.xlu0 %68
    %70 = vrot.lane.b32.xlu0 %v56, 127
    %v71 = vpop.permute.xlu0 %70
    %72 = vrot.lane.b32.xlu0 %v57, 127
    %v73 = vpop.permute.xlu0 %72
    %74 = vrot.lane.b32.xlu0 %v58, 127
    %v75 = vpop.permute.xlu0 %74
    %76 = vrot.lane.b32.xlu0 %v59, 127
    %v77 = vpop.permute.xlu0 %76
    %vm78 = vcmask 1039360
    %v79 = vsel %vm78, %v67, %v69
    %v80 = vsel %vm78, %v69, %v71
    %v81 = vsel %vm78, %v73, %v75
    %v82 = vsel %vm78, %v75, %v77
    %v89 = vadd.f32 %v46, %v79
    %v90 = vadd.f32 %v47, %v80
    %v91 = vadd.f32 %v48, %v71
    %v92 = vadd.f32 %v49, %v81
    %v93 = vadd.f32 %v50, %v82
    %v94 = vadd.f32 %v51, %v77
    %s95 = sld [smem:[#allocation2 + $0x2]]
    %v96 = vstv %s95
    %v97 = vmul.f32 %v96, %v33
    %v98 = vmul.f32 %v96, %v34
    %v99 = vmul.f32 %v96, %v35
    %v100 = vmul.f32 %v96, %v36
    %v101 = vmul.f32 %v96, %v37
    %v102 = vmul.f32 %v96, %v38
    %109 = vrot.lane.b32.xlu0 %v97, 126
    %v110 = vpop.permute.xlu0 %109
    %111 = vrot.lane.b32.xlu0 %v98, 126
    %v112 = vpop.permute.xlu0 %111
    %113 = vrot.lane.b32.xlu0 %v99, 126
    %v114 = vpop.permute.xlu0 %113
    %115 = vrot.lane.b32.xlu0 %v100, 126
    %v116 = vpop.permute.xlu0 %115
    %117 = vrot.lane.b32.xlu0 %v101, 126
    %v118 = vpop.permute.xlu0 %117
    %119 = vrot.lane.b32.xlu0 %v102, 126
    %v120 = vpop.permute.xlu0 %119
    %vm121 = vcmask 1031168
    %v122 = vsel %vm121, %v110, %v112
    %v123 = vsel %vm121, %v112, %v114
    %v124 = vsel %vm121, %v116, %v118
    %v125 = vsel %vm121, %v118, %v120
    %v132 = vadd.f32 %v89, %v122
    %v133 = vadd.f32 %v90, %v123
    %v134 = vadd.f32 %v91, %v114
    %v135 = vadd.f32 %v92, %v124
    %v136 = vadd.f32 %v93, %v125
    %v137 = vadd.f32 %v94, %v120
    %s138 = sld [smem:[#allocation2 + $0x3]]
    %v139 = vstv %s138
    %v140 = vmul.f32 %v139, %v35
    %v141 = vmul.f32 %v139, %v39
    %v142 = vmul.f32 %v139, %v40
    %v143 = vmul.f32 %v139, %v38
    %v144 = vmul.f32 %v139, %v41
    %v145 = vmul.f32 %v139, %v42
    %152 = vrot.lane.b32.xlu0 %v140, 84
    %v153 = vpop.permute.xlu0 %152
    %154 = vrot.lane.b32.xlu0 %v141, 84
    %v155 = vpop.permute.xlu0 %154
    %156 = vrot.lane.b32.xlu0 %v142, 84
    %v157 = vpop.permute.xlu0 %156
    %158 = vrot.lane.b32.xlu0 %v143, 84
    %v159 = vpop.permute.xlu0 %158
    %160 = vrot.lane.b32.xlu0 %v144, 84
    %v161 = vpop.permute.xlu0 %160
    %162 = vrot.lane.b32.xlu0 %v145, 84
    %v163 = vpop.permute.xlu0 %162
    %vm164 = vcmask 687104
    %v165 = vsel %vm164, %v153, %v155
    %v166 = vsel %vm164, %v155, %v157
    %v167 = vsel %vm164, %v159, %v161
    %v168 = vsel %vm164, %v161, %v163
    %v175 = vadd.f32 %v132, %v165
    %v176 = vadd.f32 %v133, %v166
    %v177 = vadd.f32 %v134, %v157
    %v178 = vadd.f32 %v135, %v167
    %v179 = vadd.f32 %v136, %v168
    %v180 = vadd.f32 %v137, %v163
    %s181 = sld [smem:[#allocation2 + $0x4]]
    %v182 = vstv %s181
    %v183 = vmul.f32 %v182, %v35
    %v184 = vmul.f32 %v182, %v39
    %v185 = vmul.f32 %v182, %v40
    %v186 = vmul.f32 %v182, %v38
    %v187 = vmul.f32 %v182, %v41
    %v188 = vmul.f32 %v182, %v42
    %195 = vrot.lane.b32.xlu0 %v183, 83
    %v196 = vpop.permute.xlu0 %195
    %197 = vrot.lane.b32.xlu0 %v184, 83
    %v198 = vpop.permute.xlu0 %197
    %199 = vrot.lane.b32.xlu0 %v185, 83
    %v200 = vpop.permute.xlu0 %199
    %201 = vrot.lane.b32.xlu0 %v186, 83
    %v202 = vpop.permute.xlu0 %201
    %203 = vrot.lane.b32.xlu0 %v187, 83
    %v204 = vpop.permute.xlu0 %203
    %205 = vrot.lane.b32.xlu0 %v188, 83
    %v206 = vpop.permute.xlu0 %205
    %vm207 = vcmask 678912
    %v208 = vsel %vm207, %v196, %v198
    %v209 = vsel %vm207, %v198, %v200
    %v210 = vsel %vm207, %v202, %v204
    %v211 = vsel %vm207, %v204, %v206
    %v218 = vadd.f32 %v175, %v208
    %v219 = vadd.f32 %v176, %v209
    %v220 = vadd.f32 %v177, %v200
    %v221 = vadd.f32 %v178, %v210
    %v222 = vadd.f32 %v179, %v211
    %v223 = vadd.f32 %v180, %v206
    %s224 = sld [smem:[#allocation2 + $0x5]]
    %v225 = vstv %s224
    %v226 = vmul.f32 %v225, %v35
    %v227 = vmul.f32 %v225, %v39
    %v228 = vmul.f32 %v225, %v40
    %v229 = vmul.f32 %v225, %v38
    %v230 = vmul.f32 %v225, %v41
    %v231 = vmul.f32 %v225, %v42
    %238 = vrot.lane.b32.xlu0 %v226, 82
    %v239 = vpop.permute.xlu0 %238
    %240 = vrot.lane.b32.xlu0 %v227, 82
    %v241 = vpop.permute.xlu0 %240
    %242 = vrot.lane.b32.xlu0 %v228, 82
    %v243 = vpop.permute.xlu0 %242
    %244 = vrot.lane.b32.xlu0 %v229, 82
    %v245 = vpop.permute.xlu0 %244
    %246 = vrot.lane.b32.xlu0 %v230, 82
    %v247 = vpop.permute.xlu0 %246
    %248 = vrot.lane.b32.xlu0 %v231, 82
    %v249 = vpop.permute.xlu0 %248
    %vm250 = vcmask 670720
    %v251 = vsel %vm250, %v239, %v241
    %v252 = vsel %vm250, %v241, %v243
    %v253 = vsel %vm250, %v245, %v247
    %v254 = vsel %vm250, %v247, %v249
    %v261 = vadd.f32 %v218, %v251
    %v262 = vadd.f32 %v219, %v252
    %v263 = vadd.f32 %v220, %v243
    %v264 = vadd.f32 %v221, %v253
    %v265 = vadd.f32 %v222, %v254
    %v266 = vadd.f32 %v223, %v249
    %273 = vrot.lane.b32.xlu0 %v261, 127
    %v274 = vpop.permute.xlu0 %273
    %275 = vrot.lane.b32.xlu0 %v262, 127
    %v276 = vpop.permute.xlu0 %275
    %277 = vrot.lane.b32.xlu0 %v263, 127
    %v278 = vpop.permute.xlu0 %277
    %279 = vrot.lane.b32.xlu0 %v264, 127
    %v280 = vpop.permute.xlu0 %279
    %281 = vrot.lane.b32.xlu0 %v265, 127
    %v282 = vpop.permute.xlu0 %281
    %283 = vrot.lane.b32.xlu0 %v266, 127
    %v284 = vpop.permute.xlu0 %283
    %v285 = vsel %vm78, %v274, %v276
    %v286 = vsel %vm78, %v276, %v278
    %v287 = vsel %vm78, %v280, %v282
    %v288 = vsel %vm78, %v282, %v284
    %295 = vrot.lane.b32.xlu0 %v261, 41
    %v296 = vpop.permute.xlu0 %295
    %297 = vrot.lane.b32.xlu0 %v264, 41
    %v298 = vpop.permute.xlu0 %297
    %vm301 = vcmask 334848
    %v302 = vsel %vm301, %v278, %v296
    %v303 = vsel %vm301, %v284, %v298
    %v304 = vmax.f32 %v261, %v285
    %v305 = vmax.f32 %v262, %v286
    %v306 = vmax.f32 %v263, %v302
    %v307 = vmax.f32 %v264, %v287
    %v308 = vmax.f32 %v265, %v288
    %v309 = vmax.f32 %v266, %v303
    %v310 = vld [vmem:[%s2] sm:$0xff]
    %v311 = vld [vmem:[%s2 + $0x8] sm:$0xff]
    %v312 = vld [vmem:[%s2 + $0x10] sm:$0xff]
    %v313 = vld [vmem:[%s2 + $0x18] sm:$0xff]
    %v314 = vld [vmem:[%s2 + $0x20] sm:$0xff]
    %v315 = vld [vmem:[%s2 + $0x28] sm:$0xff]
    %v316 = vld [vmem:[%s2 + $0x30] sm:$0xff]
    %v317 = vld [vmem:[%s2 + $0x38] sm:$0xff]
    %v318 = vld [vmem:[%s2 + $0x40] sm:$0xff]
    %v319 = vld [vmem:[%s2 + $0x48] sm:$0xff]
    %v320 = vld [vmem:[%s2 + $0x50] sm:$0xff]
    %v321 = vld [vmem:[%s2 + $0x58] sm:$0xff]
    %v322 = vld [vmem:[%s2 + $0x60] sm:$0xff]
    %v323 = vld [vmem:[%s2 + $0x68] sm:$0xff]
    %v324 = vld [vmem:[%s2 + $0x70] sm:$0xff]
    %v325 = vld [vmem:[%s2 + $0x78] sm:$0xff]
    %v326 = vld [vmem:[%s2 + $0x80] sm:$0xff]
    %v327 = vld [vmem:[%s2 + $0x88] sm:$0xff]
    %v328 = vld [vmem:[%s2 + $0x90] sm:$0xff]
    %v329 = vld [vmem:[%s2 + $0x98] sm:$0xff]
    %v330 = vld [vmem:[%s2 + $0xa0] sm:$0xff]
    %v331 = vld [vmem:[%s2 + $0xa8] sm:$0xff]
    %v332 = vld [vmem:[%s2 + $0xb0] sm:$0xff]
    %v333 = vld [vmem:[%s2 + $0xb8] sm:$0xff]
    %v334 = vld [vmem:[%s2 + $0xc0] sm:$0xff]
    %v335 = vld [vmem:[%s2 + $0xc8] sm:$0xff]
    %v336 = vld [vmem:[%s2 + $0xd0] sm:$0xff]
    %v337 = vld [vmem:[%s2 + $0xd8] sm:$0xff]
    %v338 = vld [vmem:[%s2 + $0xe0] sm:$0xff]
    %v339 = vld [vmem:[%s2 + $0xe8] sm:$0xff]
    %v340 = vld [vmem:[%s2 + $0xf0] sm:$0xff]
    %v341 = vld [vmem:[%s2 + $0xf8] sm:$0xff]
    %v342 = vld [vmem:[%s2 + $0x100] sm:$0xff]
    %v343 = vld [vmem:[%s2 + $0x108] sm:$0xff]
    %v344 = vld [vmem:[%s2 + $0x110] sm:$0xff]
    %v345 = vld [vmem:[%s2 + $0x118] sm:$0xff]
    %v346 = vld [vmem:[%s2 + $0x120] sm:$0xff]
    %v347 = vld [vmem:[%s2 + $0x128] sm:$0x3]
    %vm348 = vcmask 343040
    %v350 = vsel %vm348, %v306, 0
    %v353 = vsel %vm348, %v309, 0
    %vm355 = vcmask 1041408
    %v357 = vsel %vm355, %v347, 0
    %359 = vmatprep.subr.mxu0 0.0
    %360 = vmatpush1.msra.mxu0 %v310
    %361 = vmatprep.subr.mxu0 0.0
    %362 = vmatpush1.msra.mxu0 %v311
    %363 = vmatprep.subr.mxu0 0.0
    %364 = vmatpush1.msra.mxu0 %v312
    %365 = vmatprep.subr.mxu0 0.0
    %366 = vmatpush1.msra.mxu0 %v313
    %367 = vmatprep.subr.mxu0 0.0
    %368 = vmatpush1.msra.mxu0 %v314
    %369 = vmatprep.subr.mxu0 0.0
    %370 = vmatpush1.msra.mxu0 %v315
    %371 = vmatprep.subr.mxu0 0.0
    %372 = vmatpush1.msra.mxu0 %v316
    %373 = vmatprep.subr.mxu0 0.0
    %374 = vmatpush1.msra.mxu0 %v317
    %375 = vmatprep.subr.mxu0 0.0
    %376 = vmatpush1.msra.mxu0 %v318
    %377 = vmatprep.subr.mxu0 0.0
    %378 = vmatpush1.msra.mxu0 %v319
    %379 = vmatprep.subr.mxu0 0.0
    %380 = vmatpush1.msra.mxu0 %v320
    %381 = vmatprep.subr.mxu0 0.0
    %382 = vmatpush1.msra.mxu0 %v321
    %383 = vmatprep.subr.mxu0 0.0
    %384 = vmatpush1.msra.mxu0 %v322
    %385 = vmatprep.subr.mxu0 0.0
    %386 = vmatpush1.msra.mxu0 %v323
    %387 = vmatprep.subr.mxu0 0.0
    %388 = vmatpush1.msra.mxu0 %v324
    %389 = vmatprep.subr.mxu0 0.0
    %390 = vmatpush1.msra.mxu0 %v325
    %391 = vmatprep.subr.mxu0 0.0
    %392 = vmatpush1.msra.mxu0 %v326
    %393 = vmatprep.subr.mxu0 0.0
    %394 = vmatpush1.msra.mxu0 %v327
    %395 = vmatprep.subr.mxu0 0.0
    %396 = vmatpush1.msra.mxu0 %v328
    %397 = vmatprep.subr.mxu0 0.0
    %398 = vmatpush1.msra.mxu0 %v329
    %399 = vmatprep.subr.mxu0 0.0
    %400 = vmatpush1.msra.mxu0 %v330
    %401 = vmatprep.subr.mxu0 0.0
    %402 = vmatpush1.msra.mxu0 %v331
    %403 = vmatprep.subr.mxu0 0.0
    %404 = vmatpush1.msra.mxu0 %v332
    %405 = vmatprep.subr.mxu0 0.0
    %406 = vmatpush1.msra.mxu0 %v333
    %407 = vmatprep.subr.mxu0 0.0
    %408 = vmatpush1.msra.mxu0 %v334
    %409 = vmatprep.subr.mxu0 0.0
    %410 = vmatpush1.msra.mxu0 %v335
    %411 = vmatprep.subr.mxu0 0.0
    %412 = vmatpush1.msra.mxu0 %v336
    %413 = vmatprep.subr.mxu0 0.0
    %414 = vmatpush1.msra.mxu0 %v337
    %415 = vmatprep.subr.mxu0 0.0
    %416 = vmatpush1.msra.mxu0 %v338
    %417 = vmatprep.subr.mxu0 0.0
    %418 = vmatpush1.msra.mxu0 %v339
    %419 = vmatprep.subr.mxu0 0.0
    %420 = vmatpush1.msra.mxu0 %v340
    %421 = vmatprep.subr.mxu0 0.0
    %422 = vmatpush1.msra.mxu0 %v341
    %423 = vmatprep.mubr.f32.mxu0 %v305
    %424 = vmatmul.mubr.f32.gmra.mrb[0].mxu0 %v304
    %v425 = vpop.f32.mrb[0].mxu0
    %v426 = vadd.f32 0.0, %v425
    %v427 = vpop.f32.mrb[0].mxu0
    %428 = vmatprep.mubr.f32.mxu0 %v308
    %429 = vmatmul.mubr.f32.gmra.mrb[0].mxu0 %v307
    %v430 = vpop.f32.mrb[0].mxu0
    %v431 = vadd.f32 0.0, %v430
    %v432 = vpop.f32.mrb[0].mxu0
    %433 = vdwg.mxu0
    %434 = vmatprep.subr.mxu0 0.0
    %435 = vmatpush1.msra.mxu0 %v342
    %436 = vmatprep.subr.mxu0 0.0
    %437 = vmatpush1.msra.mxu0 %v343
    %438 = vmatprep.subr.mxu0 0.0
    %439 = vmatpush1.msra.mxu0 %v344
    %440 = vmatprep.subr.mxu0 0.0
    %441 = vmatpush1.msra.mxu0 %v345
    %442 = vmatprep.subr.mxu0 0.0
    %443 = vmatpush1.msra.mxu0 %v346
    %444 = vmatprep.subr.mxu0 0.0
    %445 = vmatpush1.msra.mxu0 %v357
    %446 = vmatprep.subr.mxu0 0.0
    %447 = vmatpush1.msra.mxu0 0.0
    %448 = vmatprep.subr.mxu0 0.0
    %449 = vmatpush1.msra.mxu0 0.0
    %450 = vmatprep.subr.mxu0 0.0
    %451 = vmatpush1.msra.mxu0 0.0
    %452 = vmatprep.subr.mxu0 0.0
    %453 = vmatpush1.msra.mxu0 0.0
    %454 = vmatprep.subr.mxu0 0.0
    %455 = vmatpush1.msra.mxu0 0.0
    %456 = vmatprep.subr.mxu0 0.0
    %457 = vmatpush1.msra.mxu0 0.0
    %458 = vmatprep.subr.mxu0 0.0
    %459 = vmatpush1.msra.mxu0 0.0
    %460 = vmatprep.subr.mxu0 0.0
    %461 = vmatpush1.msra.mxu0 0.0
    %462 = vmatprep.subr.mxu0 0.0
    %463 = vmatpush1.msra.mxu0 0.0
    %464 = vmatprep.subr.mxu0 0.0
    %465 = vmatpush1.msra.mxu0 0.0
    %466 = vmatprep.subr.mxu0 0.0
    %467 = vmatpush1.msra.mxu0 0.0
    %468 = vmatprep.subr.mxu0 0.0
    %469 = vmatpush1.msra.mxu0 0.0
    %470 = vmatprep.subr.mxu0 0.0
    %471 = vmatpush1.msra.mxu0 0.0
    %472 = vmatprep.subr.mxu0 0.0
    %473 = vmatpush1.msra.mxu0 0.0
    %474 = vmatprep.subr.mxu0 0.0
    %475 = vmatpush1.msra.mxu0 0.0
    %476 = vmatprep.subr.mxu0 0.0
    %477 = vmatpush1.msra.mxu0 0.0
    %478 = vmatprep.subr.mxu0 0.0
    %479 = vmatpush1.msra.mxu0 0.0
    %480 = vmatprep.subr.mxu0 0.0
    %481 = vmatpush1.msra.mxu0 0.0
    %482 = vmatprep.subr.mxu0 0.0
    %483 = vmatpush1.msra.mxu0 0.0
    %484 = vmatprep.subr.mxu0 0.0
    %485 = vmatpush1.msra.mxu0 0.0
    %486 = vmatprep.subr.mxu0 0.0
    %487 = vmatpush1.msra.mxu0 0.0
    %488 = vmatprep.subr.mxu0 0.0
    %489 = vmatpush1.msra.mxu0 0.0
    %490 = vmatprep.subr.mxu0 0.0
    %491 = vmatpush1.msra.mxu0 0.0
    %492 = vmatprep.subr.mxu0 0.0
    %493 = vmatpush1.msra.mxu0 0.0
    %494 = vmatprep.subr.mxu0 0.0
    %495 = vmatpush1.msra.mxu0 0.0
    %496 = vmatprep.subr.mxu0 0.0
    %497 = vmatpush1.msra.mxu0 0.0
    %498 = vmatprep.mubr.f32.mxu0 0.0
    %499 = vmatmul.mubr.f32.gmra.mrb[0].mxu0 %v350
    %v500 = vpop.f32.mrb[0].mxu0
    %v501 = vadd.f32 %v426, %v500
    %v502 = vpop.f32.mrb[0].mxu0
    %503 = vmatprep.mubr.f32.mxu0 0.0
    %504 = vmatmul.mubr.f32.gmra.mrb[0].mxu0 %v353
    %v505 = vpop.f32.mrb[0].mxu0
    %v506 = vadd.f32 %v431, %v505
    %v507 = vpop.f32.mrb[0].mxu0
    %508 = vdwg.mxu0
    %v510 = vlaneseq
    %v511 = vshrl.u32 %v510, 7
    %v512 = vsub.s32 0, %v511
    %v513 = vrot.slane %v43, %v512
    %v515 = vadd.f32 %v513, %v501
    %v516 = vadd.f32 %v513, %v506
    %s517 = sld [smem:[#allocation2 + $0x6]]
    %v518 = vstv %s517
    %v519 = vmul.f32 %v518, %v33
    %v520 = vmul.f32 %v518, %v34
    %v521 = vmul.f32 %v518, %v35
    %v522 = vmul.f32 %v518, %v36
    %v523 = vmul.f32 %v518, %v37
    %v524 = vmul.f32 %v518, %v38
    %s525 = sld [smem:[#allocation2 + $0x7]]
    %v526 = vstv %s525
    %v527 = vmul.f32 %v526, %v33
    %v528 = vmul.f32 %v526, %v34
    %v529 = vmul.f32 %v526, %v35
    %v530 = vmul.f32 %v526, %v36
    %v531 = vmul.f32 %v526, %v37
    %v532 = vmul.f32 %v526, %v38
    %539 = vrot.lane.b32.xlu0 %v527, 127
    %v540 = vpop.permute.xlu0 %539
    %541 = vrot.lane.b32.xlu0 %v528, 127
    %v542 = vpop.permute.xlu0 %541
    %543 = vrot.lane.b32.xlu0 %v529, 127
    %v544 = vpop.permute.xlu0 %543
    %545 = vrot.lane.b32.xlu0 %v530, 127
    %v546 = vpop.permute.xlu0 %545
    %547 = vrot.lane.b32.xlu0 %v531, 127
    %v548 = vpop.permute.xlu0 %547
    %549 = vrot.lane.b32.xlu0 %v532, 127
    %v550 = vpop.permute.xlu0 %549
    %v551 = vsel %vm78, %v540, %v542
    %v552 = vsel %vm78, %v542, %v544
    %v553 = vsel %vm78, %v546, %v548
    %v554 = vsel %vm78, %v548, %v550
    %v561 = vadd.f32 %v519, %v551
    %v562 = vadd.f32 %v520, %v552
    %v563 = vadd.f32 %v521, %v544
    %v564 = vadd.f32 %v522, %v553
    %v565 = vadd.f32 %v523, %v554
    %v566 = vadd.f32 %v524, %v550
    %s567 = sld [smem:[#allocation2 + $0x8]]
    %v568 = vstv %s567
    %v569 = vmul.f32 %v568, %v33
    %v570 = vmul.f32 %v568, %v34
    %v571 = vmul.f32 %v568, %v35
    %v572 = vmul.f32 %v568, %v36
    %v573 = vmul.f32 %v568, %v37
    %v574 = vmul.f32 %v568, %v38
    %581 = vrot.lane.b32.xlu0 %v569, 126
    %v582 = vpop.permute.xlu0 %581
    %583 = vrot.lane.b32.xlu0 %v570, 126
    %v584 = vpop.permute.xlu0 %583
    %585 = vrot.lane.b32.xlu0 %v571, 126
    %v586 = vpop.permute.xlu0 %585
    %587 = vrot.lane.b32.xlu0 %v572, 126
    %v588 = vpop.permute.xlu0 %587
    %589 = vrot.lane.b32.xlu0 %v573, 126
    %v590 = vpop.permute.xlu0 %589
    %591 = vrot.lane.b32.xlu0 %v574, 126
    %v592 = vpop.permute.xlu0 %591
    %v593 = vsel %vm121, %v582, %v584
    %v594 = vsel %vm121, %v584, %v586
    %v595 = vsel %vm121, %v588, %v590
    %v596 = vsel %vm121, %v590, %v592
    %v603 = vadd.f32 %v561, %v593
    %v604 = vadd.f32 %v562, %v594
    %v605 = vadd.f32 %v563, %v586
    %v606 = vadd.f32 %v564, %v595
    %v607 = vadd.f32 %v565, %v596
    %v608 = vadd.f32 %v566, %v592
    %s609 = sld [smem:[#allocation2 + $0x9]]
    %v610 = vstv %s609
    %v611 = vmul.f32 %v610, %v35
    %v612 = vmul.f32 %v610, %v39
    %v613 = vmul.f32 %v610, %v40
    %v614 = vmul.f32 %v610, %v38
    %v615 = vmul.f32 %v610, %v41
    %v616 = vmul.f32 %v610, %v42
    %623 = vrot.lane.b32.xlu0 %v611, 84
    %v624 = vpop.permute.xlu0 %623
    %625 = vrot.lane.b32.xlu0 %v612, 84
    %v626 = vpop.permute.xlu0 %625
    %627 = vrot.lane.b32.xlu0 %v613, 84
    %v628 = vpop.permute.xlu0 %627
    %629 = vrot.lane.b32.xlu0 %v614, 84
    %v630 = vpop.permute.xlu0 %629
    %631 = vrot.lane.b32.xlu0 %v615, 84
    %v632 = vpop.permute.xlu0 %631
    %633 = vrot.lane.b32.xlu0 %v616, 84
    %v634 = vpop.permute.xlu0 %633
    %v635 = vsel %vm164, %v624, %v626
    %v636 = vsel %vm164, %v626, %v628
    %v637 = vsel %vm164, %v630, %v632
    %v638 = vsel %vm164, %v632, %v634
    %v645 = vadd.f32 %v603, %v635
    %v646 = vadd.f32 %v604, %v636
    %v647 = vadd.f32 %v605, %v628
    %v648 = vadd.f32 %v606, %v637
    %v649 = vadd.f32 %v607, %v638
    %v650 = vadd.f32 %v608, %v634
    %s651 = sld [smem:[#allocation2 + $0xa]]
    %v652 = vstv %s651
    %v653 = vmul.f32 %v652, %v35
    %v654 = vmul.f32 %v652, %v39
    %v655 = vmul.f32 %v652, %v40
    %v656 = vmul.f32 %v652, %v38
    %v657 = vmul.f32 %v652, %v41
    %v658 = vmul.f32 %v652, %v42
    %665 = vrot.lane.b32.xlu0 %v653, 83
    %v666 = vpop.permute.xlu0 %665
    %667 = vrot.lane.b32.xlu0 %v654, 83
    %v668 = vpop.permute.xlu0 %667
    %669 = vrot.lane.b32.xlu0 %v655, 83
    %v670 = vpop.permute.xlu0 %669
    %671 = vrot.lane.b32.xlu0 %v656, 83
    %v672 = vpop.permute.xlu0 %671
    %673 = vrot.lane.b32.xlu0 %v657, 83
    %v674 = vpop.permute.xlu0 %673
    %675 = vrot.lane.b32.xlu0 %v658, 83
    %v676 = vpop.permute.xlu0 %675
    %v677 = vsel %vm207, %v666, %v668
    %v678 = vsel %vm207, %v668, %v670
    %v679 = vsel %vm207, %v672, %v674
    %v680 = vsel %vm207, %v674, %v676
    %v687 = vadd.f32 %v645, %v677
    %v688 = vadd.f32 %v646, %v678
    %v689 = vadd.f32 %v647, %v670
    %v690 = vadd.f32 %v648, %v679
    %v691 = vadd.f32 %v649, %v680
    %v692 = vadd.f32 %v650, %v676
    %s693 = sld [smem:[#allocation2 + $0xb]]
    %v694 = vstv %s693
    %v695 = vmul.f32 %v694, %v35
    %v696 = vmul.f32 %v694, %v39
    %v697 = vmul.f32 %v694, %v40
    %v698 = vmul.f32 %v694, %v38
    %v699 = vmul.f32 %v694, %v41
    %v700 = vmul.f32 %v694, %v42
    %707 = vrot.lane.b32.xlu0 %v695, 82
    %v708 = vpop.permute.xlu0 %707
    %709 = vrot.lane.b32.xlu0 %v696, 82
    %v710 = vpop.permute.xlu0 %709
    %711 = vrot.lane.b32.xlu0 %v697, 82
    %v712 = vpop.permute.xlu0 %711
    %713 = vrot.lane.b32.xlu0 %v698, 82
    %v714 = vpop.permute.xlu0 %713
    %715 = vrot.lane.b32.xlu0 %v699, 82
    %v716 = vpop.permute.xlu0 %715
    %717 = vrot.lane.b32.xlu0 %v700, 82
    %v718 = vpop.permute.xlu0 %717
    %v719 = vsel %vm250, %v708, %v710
    %v720 = vsel %vm250, %v710, %v712
    %v721 = vsel %vm250, %v714, %v716
    %v722 = vsel %vm250, %v716, %v718
    %v729 = vadd.f32 %v687, %v719
    %v730 = vadd.f32 %v688, %v720
    %v731 = vadd.f32 %v689, %v712
    %v732 = vadd.f32 %v690, %v721
    %v733 = vadd.f32 %v691, %v722
    %v734 = vadd.f32 %v692, %v718
    %741 = vrot.lane.b32.xlu0 %v729, 127
    %v742 = vpop.permute.xlu0 %741
    %743 = vrot.lane.b32.xlu0 %v730, 127
    %v744 = vpop.permute.xlu0 %743
    %745 = vrot.lane.b32.xlu0 %v731, 127
    %v746 = vpop.permute.xlu0 %745
    %747 = vrot.lane.b32.xlu0 %v732, 127
    %v748 = vpop.permute.xlu0 %747
    %749 = vrot.lane.b32.xlu0 %v733, 127
    %v750 = vpop.permute.xlu0 %749
    %751 = vrot.lane.b32.xlu0 %v734, 127
    %v752 = vpop.permute.xlu0 %751
    %v753 = vsel %vm78, %v742, %v744
    %v754 = vsel %vm78, %v744, %v746
    %v755 = vsel %vm78, %v748, %v750
    %v756 = vsel %vm78, %v750, %v752
    %763 = vrot.lane.b32.xlu0 %v729, 41
    %v764 = vpop.permute.xlu0 %763
    %765 = vrot.lane.b32.xlu0 %v732, 41
    %v766 = vpop.permute.xlu0 %765
    %v769 = vsel %vm301, %v746, %v764
    %v770 = vsel %vm301, %v752, %v766
    %v771 = vmax.f32 %v729, %v753
    %v772 = vmax.f32 %v730, %v754
    %v773 = vmax.f32 %v731, %v769
    %v774 = vmax.f32 %v732, %v755
    %v775 = vmax.f32 %v733, %v756
    %v776 = vmax.f32 %v734, %v770
    %v777 = vld [vmem:[%s3] sm:$0xff]
    %v778 = vld [vmem:[%s3 + $0x8] sm:$0xff]
    %v779 = vld [vmem:[%s3 + $0x10] sm:$0xff]
    %v780 = vld [vmem:[%s3 + $0x18] sm:$0xff]
    %v781 = vld [vmem:[%s3 + $0x20] sm:$0xff]
    %v782 = vld [vmem:[%s3 + $0x28] sm:$0xff]
    %v783 = vld [vmem:[%s3 + $0x30] sm:$0xff]
    %v784 = vld [vmem:[%s3 + $0x38] sm:$0xff]
    %v785 = vld [vmem:[%s3 + $0x40] sm:$0xff]
    %v786 = vld [vmem:[%s3 + $0x48] sm:$0xff]
    %v787 = vld [vmem:[%s3 + $0x50] sm:$0xff]
    %v788 = vld [vmem:[%s3 + $0x58] sm:$0xff]
    %v789 = vld [vmem:[%s3 + $0x60] sm:$0xff]
    %v790 = vld [vmem:[%s3 + $0x68] sm:$0xff]
    %v791 = vld [vmem:[%s3 + $0x70] sm:$0xff]
    %v792 = vld [vmem:[%s3 + $0x78] sm:$0xff]
    %v793 = vld [vmem:[%s3 + $0x80] sm:$0xff]
    %v794 = vld [vmem:[%s3 + $0x88] sm:$0xff]
    %v795 = vld [vmem:[%s3 + $0x90] sm:$0xff]
    %v796 = vld [vmem:[%s3 + $0x98] sm:$0xff]
    %v797 = vld [vmem:[%s3 + $0xa0] sm:$0xff]
    %v798 = vld [vmem:[%s3 + $0xa8] sm:$0xff]
    %v799 = vld [vmem:[%s3 + $0xb0] sm:$0xff]
    %v800 = vld [vmem:[%s3 + $0xb8] sm:$0xff]
    %v801 = vld [vmem:[%s3 + $0xc0] sm:$0xff]
    %v802 = vld [vmem:[%s3 + $0xc8] sm:$0xff]
    %v803 = vld [vmem:[%s3 + $0xd0] sm:$0xff]
    %v804 = vld [vmem:[%s3 + $0xd8] sm:$0xff]
    %v805 = vld [vmem:[%s3 + $0xe0] sm:$0xff]
    %v806 = vld [vmem:[%s3 + $0xe8] sm:$0xff]
    %v807 = vld [vmem:[%s3 + $0xf0] sm:$0xff]
    %v808 = vld [vmem:[%s3 + $0xf8] sm:$0xff]
    %v809 = vld [vmem:[%s3 + $0x100] sm:$0xff]
    %v810 = vld [vmem:[%s3 + $0x108] sm:$0xff]
    %v811 = vld [vmem:[%s3 + $0x110] sm:$0xff]
    %v812 = vld [vmem:[%s3 + $0x118] sm:$0xff]
    %v813 = vld [vmem:[%s3 + $0x120] sm:$0xff]
    %v814 = vld [vmem:[%s3 + $0x128] sm:$0x3]
    %v816 = vsel %vm348, %v773, 0
    %v819 = vsel %vm348, %v776, 0
    %v822 = vsel %vm355, %v814, 0
    %824 = vmatprep.subr.mxu0 0.0
    %825 = vmatpush1.msra.mxu0 %v777
    %826 = vmatprep.subr.mxu0 0.0
    %827 = vmatpush1.msra.mxu0 %v778
    %828 = vmatprep.subr.mxu0 0.0
    %829 = vmatpush1.msra.mxu0 %v779
    %830 = vmatprep.subr.mxu0 0.0
    %831 = vmatpush1.msra.mxu0 %v780
    %832 = vmatprep.subr.mxu0 0.0
    %833 = vmatpush1.msra.mxu0 %v781
    %834 = vmatprep.subr.mxu0 0.0
    %835 = vmatpush1.msra.mxu0 %v782
    %836 = vmatprep.subr.mxu0 0.0
    %837 = vmatpush1.msra.mxu0 %v783
    %838 = vmatprep.subr.mxu0 0.0
    %839 = vmatpush1.msra.mxu0 %v784
    %840 = vmatprep.subr.mxu0 0.0
    %841 = vmatpush1.msra.mxu0 %v785
    %842 = vmatprep.subr.mxu0 0.0
    %843 = vmatpush1.msra.mxu0 %v786
    %844 = vmatprep.subr.mxu0 0.0
    %845 = vmatpush1.msra.mxu0 %v787
    %846 = vmatprep.subr.mxu0 0.0
    %847 = vmatpush1.msra.mxu0 %v788
    %848 = vmatprep.subr.mxu0 0.0
    %849 = vmatpush1.msra.mxu0 %v789
    %850 = vmatprep.subr.mxu0 0.0
    %851 = vmatpush1.msra.mxu0 %v790
    %852 = vmatprep.subr.mxu0 0.0
    %853 = vmatpush1.msra.mxu0 %v791
    %854 = vmatprep.subr.mxu0 0.0
    %855 = vmatpush1.msra.mxu0 %v792
    %856 = vmatprep.subr.mxu0 0.0
    %857 = vmatpush1.msra.mxu0 %v793
    %858 = vmatprep.subr.mxu0 0.0
    %859 = vmatpush1.msra.mxu0 %v794
    %860 = vmatprep.subr.mxu0 0.0
    %861 = vmatpush1.msra.mxu0 %v795
    %862 = vmatprep.subr.mxu0 0.0
    %863 = vmatpush1.msra.mxu0 %v796
    %864 = vmatprep.subr.mxu0 0.0
    %865 = vmatpush1.msra.mxu0 %v797
    %866 = vmatprep.subr.mxu0 0.0
    %867 = vmatpush1.msra.mxu0 %v798
    %868 = vmatprep.subr.mxu0 0.0
    %869 = vmatpush1.msra.mxu0 %v799
    %870 = vmatprep.subr.mxu0 0.0
    %871 = vmatpush1.msra.mxu0 %v800
    %872 = vmatprep.subr.mxu0 0.0
    %873 = vmatpush1.msra.mxu0 %v801
    %874 = vmatprep.subr.mxu0 0.0
    %875 = vmatpush1.msra.mxu0 %v802
    %876 = vmatprep.subr.mxu0 0.0
    %877 = vmatpush1.msra.mxu0 %v803
    %878 = vmatprep.subr.mxu0 0.0
    %879 = vmatpush1.msra.mxu0 %v804
    %880 = vmatprep.subr.mxu0 0.0
    %881 = vmatpush1.msra.mxu0 %v805
    %882 = vmatprep.subr.mxu0 0.0
    %883 = vmatpush1.msra.mxu0 %v806
    %884 = vmatprep.subr.mxu0 0.0
    %885 = vmatpush1.msra.mxu0 %v807
    %886 = vmatprep.subr.mxu0 0.0
    %887 = vmatpush1.msra.mxu0 %v808
    %888 = vmatprep.mubr.f32.mxu0 %v772
    %889 = vmatmul.mubr.f32.gmra.mrb[0].mxu0 %v771
    %v890 = vpop.f32.mrb[0].mxu0
    %v891 = vadd.f32 0.0, %v890
    %v892 = vpop.f32.mrb[0].mxu0
    %893 = vmatprep.mubr.f32.mxu0 %v775
    %894 = vmatmul.mubr.f32.gmra.mrb[0].mxu0 %v774
    %v895 = vpop.f32.mrb[0].mxu0
    %v896 = vadd.f32 0.0, %v895
    %v897 = vpop.f32.mrb[0].mxu0
    %898 = vdwg.mxu0
    %899 = vmatprep.subr.mxu0 0.0
    %900 = vmatpush1.msra.mxu0 %v809
    %901 = vmatprep.subr.mxu0 0.0
    %902 = vmatpush1.msra.mxu0 %v810
    %903 = vmatprep.subr.mxu0 0.0
    %904 = vmatpush1.msra.mxu0 %v811
    %905 = vmatprep.subr.mxu0 0.0
    %906 = vmatpush1.msra.mxu0 %v812
    %907 = vmatprep.subr.mxu0 0.0
    %908 = vmatpush1.msra.mxu0 %v813
    %909 = vmatprep.subr.mxu0 0.0
    %910 = vmatpush1.msra.mxu0 %v822
    %911 = vmatprep.subr.mxu0 0.0
    %912 = vmatpush1.msra.mxu0 0.0
    %913 = vmatprep.subr.mxu0 0.0
    %914 = vmatpush1.msra.mxu0 0.0
    %915 = vmatprep.subr.mxu0 0.0
    %916 = vmatpush1.msra.mxu0 0.0
    %917 = vmatprep.subr.mxu0 0.0
    %918 = vmatpush1.msra.mxu0 0.0
    %919 = vmatprep.subr.mxu0 0.0
    %920 = vmatpush1.msra.mxu0 0.0
    %921 = vmatprep.subr.mxu0 0.0
    %922 = vmatpush1.msra.mxu0 0.0
    %923 = vmatprep.subr.mxu0 0.0
    %924 = vmatpush1.msra.mxu0 0.0
    %925 = vmatprep.subr.mxu0 0.0
    %926 = vmatpush1.msra.mxu0 0.0
    %927 = vmatprep.subr.mxu0 0.0
    %928 = vmatpush1.msra.mxu0 0.0
    %929 = vmatprep.subr.mxu0 0.0
    %930 = vmatpush1.msra.mxu0 0.0
    %931 = vmatprep.subr.mxu0 0.0
    %932 = vmatpush1.msra.mxu0 0.0
    %933 = vmatprep.subr.mxu0 0.0
    %934 = vmatpush1.msra.mxu0 0.0
    %935 = vmatprep.subr.mxu0 0.0
    %936 = vmatpush1.msra.mxu0 0.0
    %937 = vmatprep.subr.mxu0 0.0
    %938 = vmatpush1.msra.mxu0 0.0
    %939 = vmatprep.subr.mxu0 0.0
    %940 = vmatpush1.msra.mxu0 0.0
    %941 = vmatprep.subr.mxu0 0.0
    %942 = vmatpush1.msra.mxu0 0.0
    %943 = vmatprep.subr.mxu0 0.0
    %944 = vmatpush1.msra.mxu0 0.0
    %945 = vmatprep.subr.mxu0 0.0
    %946 = vmatpush1.msra.mxu0 0.0
    %947 = vmatprep.subr.mxu0 0.0
    %948 = vmatpush1.msra.mxu0 0.0
    %949 = vmatprep.subr.mxu0 0.0
    %950 = vmatpush1.msra.mxu0 0.0
    %951 = vmatprep.subr.mxu0 0.0
    %952 = vmatpush1.msra.mxu0 0.0
    %953 = vmatprep.subr.mxu0 0.0
    %954 = vmatpush1.msra.mxu0 0.0
    %955 = vmatprep.subr.mxu0 0.0
    %956 = vmatpush1.msra.mxu0 0.0
    %957 = vmatprep.subr.mxu0 0.0
    %958 = vmatpush1.msra.mxu0 0.0
    %959 = vmatprep.subr.mxu0 0.0
    %960 = vmatpush1.msra.mxu0 0.0
    %961 = vmatprep.subr.mxu0 0.0
    %962 = vmatpush1.msra.mxu0 0.0
    %963 = vmatprep.mubr.f32.mxu0 0.0
    %964 = vmatmul.mubr.f32.gmra.mrb[0].mxu0 %v816
    %v965 = vpop.f32.mrb[0].mxu0
    %v966 = vadd.f32 %v891, %v965
    %v967 = vpop.f32.mrb[0].mxu0
    %968 = vmatprep.mubr.f32.mxu0 0.0
    %969 = vmatmul.mubr.f32.gmra.mrb[0].mxu0 %v819
    %v970 = vpop.f32.mrb[0].mxu0
    %v971 = vadd.f32 %v896, %v970
    %v972 = vpop.f32.mrb[0].mxu0
    %973 = vdwg.mxu0
    %v974 = vadd.f32 %v515, %v966
    %v975 = vadd.f32 %v516, %v971
    %vm976 = vcmask 23552
    %v977 = vsel %vm976, %v974, -inf
    %978 = vmax.xlane.f32.xlu0 %v977
    %v979 = vpop.xlane.xlu0 %978
    %v980 = vsel %vm976, %v975, -inf
    %981 = vmax.xlane.f32.xlu0 %v980
    %v982 = vpop.xlane.xlu0 %981
    %v983 = vsub.f32 %v974, %v979
    %v984 = vsub.f32 %v975, %v982
    %v985 = vmul.f32 %v983, 1.442695
    %v986 = vpow.pop %v985
    %v987 = vmul.f32 %v984, 1.442695
    %v988 = vpow.pop %v987
    %v989 = vsel %vm976, %v986, 0.0
    %990 = vadd.xlane.f32.xlu0 %v989
    %v991 = vpop.xlane.xlu0 %990
    %v992 = vsel %vm976, %v988, 0.0
    %993 = vadd.xlane.f32.xlu0 %v992
    %v994 = vpop.xlane.xlu0 %993
    %v995 = vrcp.pop %v991
    %v996 = vmul.f32 %v986, %v995
    %v997 = vrcp.pop %v994
    %v998 = vmul.f32 %v988, %v997
    %999 = vst.msk [vmem:[%s5] sm:$0xff] %vm976, %v996
    %1000 = vst.msk [vmem:[%s5 + $0x8] sm:$0xff] %vm976, %v998
    // Predicated region
    $region26: #{beepnet_forward.1} parent=1 // pred_check
      _
    $region27: #{beepnet_forward.1} parent=1 // pred_check_branch
      %1002 = sbr.rel (0) target = $region29
    $region28: #{beepnet_forward.1} parent=1 // pred_region
      _
    $region29: #{beepnet_forward.1} parent=1 // pred_fallthru
      _
    // Predicated region
    $region30: #{beepnet_forward.1} parent=1 // pred_check
      _
    $region31: #{beepnet_forward.1} parent=1 // pred_check_branch
      %1004 = sbr.rel (0) target = $region33
    $region32: #{beepnet_forward.1} parent=1 // pred_region
      _
    $region33: #{beepnet_forward.1} parent=1 // pred_fallthru
      _
    %1005 = vsyncpa [#allocation3], 1

</llo_original>
